<compile_context>
chip_gen: v5e
topology: v5e:2x2
jax: 0.10.0
libtpu: 0.0.40
codegen_flags: <defaults>
</compile_context>

<pallas_src>
import jax
import jax.numpy as jnp
import numpy as np
from jax.experimental import pallas as pl
from jax.experimental.pallas import tpu as pltpu

_HALF_LOG_2PI = 0.5 * float(np.log(2.0 * np.pi))


def _logprob_kernel(const_ref, xp_ref, mb_ref, g_ref, o_ref):
    # const_ref : (1,) SMEM scalar = log|det W| - d*0.5*log(2pi)
    # xp_ref    : (TR, 128) lane-packed samples (p = 128//d samples per row)
    # mb_ref    : (128, 128) block-diag kron(I_p, -0.5 * W^T W)   (stationary RHS)
    # g_ref     : (128, p)   block-diag group-sum kron(I_p, 1_d)  (stationary RHS)
    # o_ref     : (TR, p) per-sample log-probabilities
    xp = xp_ref[...]
    # y[r, d*k+j] = -0.5 * (W^T W x_{sample}) _j   -- lane-dense, K=128 on the MXU
    y = jnp.dot(xp, mb_ref[...], preferred_element_type=jnp.float32)
    z = xp * y                                    # VPU, full 128-lane width
    # group-sum over each sample's d lanes -> -0.5 * ||W x||^2 per sample
    q = jnp.dot(z, g_ref[...], preferred_element_type=jnp.float32)
    o_ref[...] = (q + const_ref[0]).astype(o_ref.dtype)


def _pick_rows_per_tile(n_rows, cap=4096):
    """Rows of the packed (R,128) array per grid step.
    cap=4096 rows == 65536 samples/tile (~2 MiB/buffer); keep >=4 grid steps when
    possible so v7x megacore has work for both TensorCores; multiples of 8."""
    if n_rows <= 8:
        return n_rows                       # single small full-extent block
    tr = (n_rows // 4) // 8 * 8             # aim for >= 4 steps
    return max(8, min(cap, tr))


def base_flow_log_prob(x, w, *, rows_per_tile=None):
    """logprob(x) of a linear flow with factorized standard-Gaussian prior.

    x : (N, d) float32 samples
    w : (d, d) float32 embedder weight (nn.Linear convention: s = x @ W.T)
    returns (N,) float32
    """
    n, d = x.shape
    assert w.shape == (d, d)
    # TODO(synk): lane-packed layout requires d | 128; other component counts
    # would need a padded feature axis.
    assert 128 % d == 0, "n_comp must divide 128 for the lane-packed layout"
    per_row = 128 // d

    x = x.astype(jnp.float32)
    w = w.astype(jnp.float32)

    # Pad the sample axis only if it does not pack into whole 128-lane rows.
    n_pad = pl.cdiv(n, per_row) * per_row
    if n_pad != n:
        x = jnp.pad(x, ((0, n_pad - n), (0, 0)))
    n_rows = n_pad // per_row
    # Metadata-only reshape (row-major): (N, d) == (N/per_row, 128). No HBM copy.
    x_packed = x.reshape(n_rows, 128)

    if rows_per_tile is None:
        rows_per_tile = _pick_rows_per_tile(n_rows)
    grid = (pl.cdiv(n_rows, rows_per_tile),)

    # Tiny d x d glue, computed once:
    #   Mb = kron(I_p, -0.5 * W^T W)   (symmetric blocks -> orientation-safe)
    #   G  = kron(I_p, ones(d,1))      (per-sample group-sum)
    m = -0.5 * (w.T @ w)
    eye_p = jnp.eye(per_row, dtype=jnp.float32)
    mb = jnp.kron(eye_p, m)                                          # (128, 128)
    g = jnp.kron(eye_p, jnp.ones((d, 1), dtype=jnp.float32))         # (128, p)

    # log|det W| + Gaussian normalization folded into one SMEM scalar added
    # inside the kernel (no separate elementwise pass over the (N,) output).
    _, logabsdet = jnp.linalg.slogdet(w)
    const = (logabsdet - d * _HALF_LOG_2PI).reshape(1).astype(jnp.float32)

    out = pl.pallas_call(
        _logprob_kernel,
        out_shape=jax.ShapeDtypeStruct((n_rows, per_row), jnp.float32),
        grid_spec=pltpu.PrefetchScalarGridSpec(
            num_scalar_prefetch=0,
            grid=grid,
            in_specs=[
                pl.BlockSpec(memory_space=pltpu.MemorySpace.SMEM),       # const
                pl.BlockSpec((rows_per_tile, 128), lambda i: (i, 0)),    # samples
                pl.BlockSpec((128, 128), lambda i: (0, 0)),              # Mb (resident)
                pl.BlockSpec((128, per_row), lambda i: (0, 0)),          # G  (resident)
            ],
            out_specs=pl.BlockSpec((rows_per_tile, per_row), lambda i: (i, 0)),
        ),
        compiler_params=pltpu.CompilerParams(
            dimension_semantics=("parallel",),
            vmem_limit_bytes=32 * 1024 * 1024,
        ),
    )(const, x_packed, mb, g)

    return out.reshape(-1)[:n]


def base_flow_sample(key, sample_shape, a_true, n_comp):
    """sample(): s ~ prior, x = generator_true(s). Plain-JAX glue (not the hot path)."""
    s = jax.random.normal(key, sample_shape + (n_comp,), dtype=jnp.float32)
    return s @ a_true.T


# TODO(synk): BaseMultivariate.score() (torch.autograd Jacobian of log_prob wrt
# parameters) is host-side autodiff glue; use jax.jacrev over base_flow_log_prob
# with respect to `w` if needed -- no Pallas equivalent required.


def _log_prob_reference(x, w):
    s = x @ w.T
    logmarg = jnp.sum(-0.5 * s * s - _HALF_LOG_2PI, axis=-1)
    _, logabsdet = jnp.linalg.slogdet(w)
    return logmarg + logabsdet


if __name__ == "__main__":
    key = jax.random.PRNGKey(0)
    k_x, k_w, k_a, k_s = jax.random.split(key, 4)

    n_samples, n_comp = 256, 8

    # Deterministic synthetic parameters (no checkpoint loading).
    w = jax.random.normal(k_w, (n_comp, n_comp), dtype=jnp.float32) * 0.5 \
        + jnp.eye(n_comp, dtype=jnp.float32)                      # embedder weight
    a_true = jnp.linalg.inv(w)                                    # generator_true weight
    x = jax.random.normal(k_x, (n_samples, n_comp), dtype=jnp.float32)

    # Exercise sample() path (glue).
    _ = base_flow_sample(k_s, (4,), a_true, n_comp)

    logprob = base_flow_log_prob(x, w)   # packed rows R=16, tile=8 rows -> 2 grid steps
    jax.block_until_ready(logprob)

    ref = _log_prob_reference(x, w)
    assert logprob.shape == (n_samples,)
    np.testing.assert_allclose(np.asarray(logprob), np.asarray(ref),
                               rtol=1e-4, atol=1e-4)

    print("KERNEL_OK")
</pallas_src>

<mosaic_0001>
module attributes {stable_mosaic.version = 11 : i64} {
  func.func @_logprob_kernel(%arg0: i32, %arg1: memref<1xf32, #tpu.memory_space<smem>>, %arg2: memref<8x128xf32, #tpu.memory_space<vmem>>, %arg3: memref<128x128xf32, #tpu.memory_space<vmem>>, %arg4: memref<128x16xf32, #tpu.memory_space<vmem>>, %arg5: memref<8x16xf32, #tpu.memory_space<vmem>>) attributes {dimension_semantics = [#tpu.dimension_semantics<parallel>], iteration_bounds = array<i64: 2>, scalar_prefetch = 0 : i64, scratch_operands = 0 : i64, tpu.core_type = #tpu.core_type<tc>, window_params = [{transform_indices = @transform_0, window_bounds = array<i64: 1>}, {transform_indices = @transform_1, window_bounds = array<i64: 8, 128>}, {pipeline_mode = #tpu.pipeline_mode<synchronous>, transform_indices = @transform_2, window_bounds = array<i64: 128, 128>}, {pipeline_mode = #tpu.pipeline_mode<synchronous>, transform_indices = @transform_3, window_bounds = array<i64: 128, 16>}, {transform_indices = @transform_4, window_bounds = array<i64: 8, 16>}]} {
    %c0 = arith.constant 0 : index
    %c0_0 = arith.constant 0 : index
    %0 = vector.load %arg2[%c0, %c0_0] : memref<8x128xf32, #tpu.memory_space<vmem>>, vector<8x128xf32>
    %c0_1 = arith.constant 0 : index
    %c0_2 = arith.constant 0 : index
    %1 = vector.load %arg3[%c0_1, %c0_2] : memref<128x128xf32, #tpu.memory_space<vmem>>, vector<128x128xf32>
    %cst = arith.constant dense<0.000000e+00> : vector<8x128xf32>
    %2 = tpu.matmul %0, %1, %cst {dimension_numbers = #tpu.dot_dimension_numbers<[1], [0], [0], [1], [0, 0, 1, 1], [], []>} : vector<8x128xf32>, vector<128x128xf32>, vector<8x128xf32> -> vector<8x128xf32>
    %3 = arith.mulf %0, %2 : vector<8x128xf32>
    %c0_3 = arith.constant 0 : index
    %c0_4 = arith.constant 0 : index
    %4 = vector.load %arg4[%c0_3, %c0_4] : memref<128x16xf32, #tpu.memory_space<vmem>>, vector<128x16xf32>
    %cst_5 = arith.constant dense<0.000000e+00> : vector<8x16xf32>
    %5 = tpu.matmul %3, %4, %cst_5 {dimension_numbers = #tpu.dot_dimension_numbers<[1], [0], [0], [1], [0, 0, 1, 1], [], []>} : vector<8x128xf32>, vector<128x16xf32>, vector<8x16xf32> -> vector<8x16xf32>
    %c0_6 = arith.constant 0 : index
    %6 = memref.load %arg1[%c0_6] : memref<1xf32, #tpu.memory_space<smem>>
    %7 = vector.broadcast %6 : f32 to vector<8x16xf32>
    %8 = arith.addf %5, %7 : vector<8x16xf32>
    %c0_7 = arith.constant 0 : index
    %c0_8 = arith.constant 0 : index
    %9 = vector.load %arg5[%c0_7, %c0_8] : memref<8x16xf32, #tpu.memory_space<vmem>>, vector<8x16xf32>
    tpu.vector_store %arg5[%c0_7, %c0_8], %8 {strides = array<i32>} : memref<8x16xf32, #tpu.memory_space<vmem>>, vector<8x16xf32>,
    return
  }
  func.func @transform_0(%arg0: i32) -> i32 {
    %c0_i32 = arith.constant 0 : i32
    %c0_i32_0 = arith.constant 0 : i32
    return %c0_i32 : i32
  }
  func.func @transform_1(%arg0: i32) -> (i32, i32) {
    %c0_i32 = arith.constant 0 : i32
    %c0_i32_0 = arith.constant 0 : i32
    return %arg0, %c0_i32 : i32, i32
  }
  func.func @transform_2(%arg0: i32) -> (i32, i32) {
    %c0_i32 = arith.constant 0 : i32
    %c0_i32_0 = arith.constant 0 : i32
    %c0_i32_1 = arith.constant 0 : i32
    return %c0_i32, %c0_i32_0 : i32, i32
  }
  func.func @transform_3(%arg0: i32) -> (i32, i32) {
    %c0_i32 = arith.constant 0 : i32
    %c0_i32_0 = arith.constant 0 : i32
    %c0_i32_1 = arith.constant 0 : i32
    return %c0_i32, %c0_i32_0 : i32, i32
  }
  func.func @transform_4(%arg0: i32) -> (i32, i32) {
    %c0_i32 = arith.constant 0 : i32
    %c0_i32_0 = arith.constant 0 : i32
    return %arg0, %c0_i32 : i32, i32
  }
}

</mosaic_0001>

<llo_original>
// kernel: tpu_custom_call.1
$region0: #{tpu_custom_call.1}
  #allocation0 [shape = 'u32[]', space=smem, size = 0x4, offset = 0x4, fixed_abs, tag = 'smem constant byte address 0x4 - core index']
  #allocation1 [shape = 'u32[72,128]{1,0:T(1,128)}', space=vmem, size = 0x9000, scoped, tag = 'internal scratch']
  #allocation2 [shape = 'f32[1]{0:T(128)S(6)}', space=smem, size = 0x200, scoped, tag = 'scoped memory for tpu_custom_call.1']
  %s0 = inlined_call_operand.<no memory space> [shape: f32[1], index: 0, kind: input, shape index: {}]
  %s1 = inlined_call_operand.vmem [shape: f32[16,128], index: 1, kind: input, shape index: {}]
  %s2 = inlined_call_operand.vmem [shape: f32[128,128], index: 2, kind: input, shape index: {}]
  %s3 = inlined_call_operand.vmem [shape: f32[128,16], index: 3, kind: input, shape index: {}]
  %s4 = inlined_call_operand.hbm [shape: f32[16,16], index: 4, kind: output, shape index: {}]
  %s5 = sld [smem:[#allocation0]]
  $region49: #{tpu_custom_call.1} parent=0
    _
  %s7 = ssub.s32 1, %s5
  %s8 = scalar_select 0, %s7, %s5
  %9 = sst [smem:[#allocation2]] %s0
  $region1: #{tpu_custom_call.1} parent=0
    #allocation3 [shape = 'u8[8192]{0}', space=vmem, size = 0x2000, scoped, tag = 'output window, operand 0']
    #allocation4 [shape = 's32[2]{0}', space=sflag, size = 0x8, scoped, tag = 'scoped memory for tpu_custom_call.1']
    %10 = vsyncpa [#allocation4], 0
    %s11 = scalar_lea.sflag [#allocation4], 1
    %12 = vsyncpa %s11, 0
    loop: start=0, step=1, limit=4
    $region2: #{tpu_custom_call.1} parent=1 // loop_pre_header
      _
    $region3: #{tpu_custom_call.1} parent=1 // loop_header
      %s14 = sphi 0, %s18
      %p15 = scmp.ge.s32.totalorder %s14, 4
      %s22 = sphi 0, %s22
      %s24 = sphi 0, %s22
      %s25 = sphi 0, %s24
      %s39 = sphi 0, %s25
      %s45 = sphi 0, %s47
      %s48 = sphi 0, %s45
      %s49 = sphi 0, %s48
      %s65 = sphi 0, %s49
      %s69 = sphi 0, %s69
      %s71 = sphi 0, %s69
      %s72 = sphi 0, %s71
      %s86 = sphi 0, %s72
      %s90 = sphi 0, %s90
      %s92 = sphi 0, %s90
      %s93 = sphi 0, %s92
      %s107 = sphi 0, %s93
      %s113 = sphi 0, %s115
      %s116 = sphi 0, %s113
      %s117 = sphi 0, %s116
      %s133 = sphi 0, %s117
    $region4: #{tpu_custom_call.1} parent=1 // loop_header_branch
      %17 = sbr.rel (%p15) target = $region8
    $region5: #{tpu_custom_call.1} parent=1 // loop_body
      %s19 = ssub.s32 %s14, 1
      %s20 = ssub.s32 %s14, 2
      %s21 = sadd.s32 %s14, 1
      %s23 = sadd.s32 %s22, 1
      %p26 = scmp.eq.s32.totalorder %s14, 1
      %p27 = scmp.ne.s32.totalorder %s22, %s24
      %p28 = scmp.eq.s32.totalorder %s14, 0
      %p29 = por %p27, %p28
      %p30 = scmp.ne.s32.totalorder %s22, %s24
      %p31 = scmp.eq.s32.totalorder %s19, 1
      %p32 = por %p30, %p31
      %p33 = scmp.ne.s32.totalorder %s24, %s25
      %p34 = scmp.eq.s32.totalorder %s19, 0
      %p35 = por %p33, %p34
      %p36 = scmp.ne.s32.totalorder %s24, %s25
      %p37 = scmp.eq.s32.totalorder %s20, 1
      %p38 = por %p36, %p37
      %p40 = scmp.ne.s32.totalorder %s25, %s39
      %p41 = scmp.eq.s32.totalorder %s20, 0
      %p42 = por %p40, %p41
      %s43 = ssub.s32 %s14, %s21
      %p44 = scmp.eq.s32.totalorder %s43, 0
      %s46 = sadd.s32 %s45, 1
      %s47 = scalar_select %p44, %s45, %s46
      %p50 = pneg %p44
      %p51 = scmp.eq.s32.totalorder %s14, 1
      %p52 = por %p50, %p51
      %p53 = scmp.ne.s32.totalorder %s45, %s48
      %p54 = scmp.eq.s32.totalorder %s14, 0
      %p55 = por %p53, %p54
      %p56 = scmp.ne.s32.totalorder %s45, %s48
      %p57 = scmp.eq.s32.totalorder %s19, 1
      %p58 = por %p56, %p57
      %p59 = scmp.ne.s32.totalorder %s48, %s49
      %p60 = scmp.eq.s32.totalorder %s19, 0
      %p61 = por %p59, %p60
      %p62 = scmp.ne.s32.totalorder %s48, %s49
      %p63 = scmp.eq.s32.totalorder %s20, 1
      %p64 = por %p62, %p63
      %p66 = scmp.ne.s32.totalorder %s49, %s65
      %p67 = scmp.eq.s32.totalorder %s20, 0
      %p68 = por %p66, %p67
      %s70 = sadd.s32 %s69, 1
      %p73 = scmp.eq.s32.totalorder %s14, 1
      %p74 = scmp.ne.s32.totalorder %s69, %s71
      %p75 = scmp.eq.s32.totalorder %s14, 0
      %p76 = por %p74, %p75
      %p77 = scmp.ne.s32.totalorder %s69, %s71
      %p78 = scmp.eq.s32.totalorder %s19, 1
      %p79 = por %p77, %p78
      %p80 = scmp.ne.s32.totalorder %s71, %s72
      %p81 = scmp.eq.s32.totalorder %s19, 0
      %p82 = por %p80, %p81
      %p83 = scmp.ne.s32.totalorder %s71, %s72
      %p84 = scmp.eq.s32.totalorder %s20, 1
      %p85 = por %p83, %p84
      %p87 = scmp.ne.s32.totalorder %s72, %s86
      %p88 = scmp.eq.s32.totalorder %s20, 0
      %p89 = por %p87, %p88
      %s91 = sadd.s32 %s90, 1
      %p94 = scmp.eq.s32.totalorder %s14, 1
      %p95 = scmp.ne.s32.totalorder %s90, %s92
      %p96 = scmp.eq.s32.totalorder %s14, 0
      %p97 = por %p95, %p96
      %p98 = scmp.ne.s32.totalorder %s90, %s92
      %p99 = scmp.eq.s32.totalorder %s19, 1
      %p100 = por %p98, %p99
      %p101 = scmp.ne.s32.totalorder %s92, %s93
      %p102 = scmp.eq.s32.totalorder %s19, 0
      %p103 = por %p101, %p102
      %p104 = scmp.ne.s32.totalorder %s92, %s93
      %p105 = scmp.eq.s32.totalorder %s20, 1
      %p106 = por %p104, %p105
      %p108 = scmp.ne.s32.totalorder %s93, %s107
      %p109 = scmp.eq.s32.totalorder %s20, 0
      %p110 = por %p108, %p109
      %s111 = ssub.s32 %s14, %s21
      %p112 = scmp.eq.s32.totalorder %s111, 0
      %s114 = sadd.s32 %s113, 1
      %s115 = scalar_select %p112, %s113, %s114
      %p118 = pneg %p112
      %p119 = scmp.eq.s32.totalorder %s14, 1
      %p120 = por %p118, %p119
      %p121 = scmp.ne.s32.totalorder %s113, %s116
      %p122 = scmp.eq.s32.totalorder %s14, 0
      %p123 = por %p121, %p122
      %p124 = scmp.ne.s32.totalorder %s113, %s116
      %p125 = scmp.eq.s32.totalorder %s19, 1
      %p126 = por %p124, %p125
      %p127 = scmp.ne.s32.totalorder %s116, %s117
      %p128 = scmp.eq.s32.totalorder %s19, 0
      %p129 = por %p127, %p128
      %p130 = scmp.ne.s32.totalorder %s116, %s117
      %p131 = scmp.eq.s32.totalorder %s20, 1
      %p132 = por %p130, %p131
      %p134 = scmp.ne.s32.totalorder %s117, %s133
      %p135 = scmp.eq.s32.totalorder %s20, 0
      %p136 = por %p134, %p135
      %p137 = scmp.le.s32.totalorder 1, %s14
      %p138 = scmp.lt.s32.totalorder %s14, 3
      %p139 = pnand %p137, %p138
      %p140 = pneg %p139
      // Predicated region
      $region9: #{tpu_custom_call.1} parent=5 // pred_check
        _
      $region10: #{tpu_custom_call.1} parent=5 // pred_check_branch
        %142 = sbr.rel (%p139) target = $region12
      $region11: #{tpu_custom_call.1} parent=5 // pred_region
        %s143 = ssub.s32 %s14, 1
        // Predicated region
        $region13: #{tpu_custom_call.1} parent=11 // pred_check
          %p144 = pneg %p35
        $region14: #{tpu_custom_call.1} parent=11 // pred_check_branch
          %146 = sbr.rel (%p144) target = $region16
        $region15: #{tpu_custom_call.1} parent=11 // pred_region
          _
        $region16: #{tpu_custom_call.1} parent=11 // pred_fallthru
          _
        // Predicated region
        $region17: #{tpu_custom_call.1} parent=11 // pred_check
          %p147 = pneg %p82
        $region18: #{tpu_custom_call.1} parent=11 // pred_check_branch
          %149 = sbr.rel (%p147) target = $region20
        $region19: #{tpu_custom_call.1} parent=11 // pred_region
          _
        $region20: #{tpu_custom_call.1} parent=11 // pred_fallthru
          _
        // Predicated region
        $region21: #{tpu_custom_call.1} parent=11 // pred_check
          %p150 = pneg %p103
        $region22: #{tpu_custom_call.1} parent=11 // pred_check_branch
          %152 = sbr.rel (%p150) target = $region24
        $region23: #{tpu_custom_call.1} parent=11 // pred_region
          _
        $region24: #{tpu_custom_call.1} parent=11 // pred_fallthru
          _
      $region12: #{tpu_custom_call.1} parent=5 // pred_fallthru
        _
      %p153 = scmp.lt.s32.totalorder %s14, 2
      // Predicated region
      $region25: #{tpu_custom_call.1} parent=5 // pred_check
        %p154 = pneg %p153
      $region26: #{tpu_custom_call.1} parent=5 // pred_check_branch
        %156 = sbr.rel (%p154) target = $region28
      $region27: #{tpu_custom_call.1} parent=5 // pred_region
        // Predicated region
        $region29: #{tpu_custom_call.1} parent=27 // pred_check
          %p157 = pneg %p55
        $region30: #{tpu_custom_call.1} parent=27 // pred_check_branch
          %159 = sbr.rel (%p157) target = $region32
        $region31: #{tpu_custom_call.1} parent=27 // pred_region
          %p160 = scmp.lt.s32.totalorder %s14, 1
          %s161 = scalar_select %p160, %s14, 1
          %s162 = smul.addr %s161, 8
          %s163 = scalar_lea.vmem %s1, %s162
        $region32: #{tpu_custom_call.1} parent=27 // pred_fallthru
          _
      $region28: #{tpu_custom_call.1} parent=5 // pred_fallthru
        _
      %p164 = scmp.le.s32.totalorder 1, %s14
      %p165 = scmp.lt.s32.totalorder %s14, 3
      %p166 = pnand %p164, %p165
      %p167 = pneg %p166
      // Predicated region
      $region33: #{tpu_custom_call.1} parent=5 // pred_check
        _
      $region34: #{tpu_custom_call.1} parent=5 // pred_check_branch
        %169 = sbr.rel (%p166) target = $region36
      $region35: #{tpu_custom_call.1} parent=5 // pred_region
        %s170 = ssub.s32 %s14, 1
        %p171 = pneg %p35
        %p172 = pneg %p32
        %p173 = scmp.lt.s32.totalorder %s19, 1
        %s174 = scalar_select %p173, %s19, 1
        %s175 = smul.addr %s174, 8
        %s176 = scalar_lea.vmem %s1, %s175
        %p177 = pneg %p61
        %p178 = pneg %p58
        %p179 = pneg %p82
        %p180 = pneg %p79
        %p181 = pneg %p103
        %p182 = pneg %p100
        %p183 = pneg %p129
        %p184 = pneg %p126
        %s185 = sand.u32 %s116, 1
        %s186 = scalar_lea.sflag [#allocation4], %s185
        %s187 = sand.u32 %s116, 1
        %s188 = smul.addr %s187, 8
        %s189 = scalar_lea.vmem [#allocation3], %s188
        %p190 = scmp.lt.s32.totalorder %s19, 1
        %s191 = scalar_select %p190, %s19, 1
        %s192 = smul.addr %s191, 8
        %s193 = scalar_lea.vmem %s1, %s192
        %v194 = vld [vmem:[%s193] sm:$0xff]
        %v195 = vld [vmem:[%s2] sm:$0xff]
        %v196 = vld [vmem:[%s2 + $0x8] sm:$0xff]
        %v197 = vld [vmem:[%s2 + $0x10] sm:$0xff]
        %v198 = vld [vmem:[%s2 + $0x18] sm:$0xff]
        %v199 = vld [vmem:[%s2 + $0x20] sm:$0xff]
        %v200 = vld [vmem:[%s2 + $0x28] sm:$0xff]
        %v201 = vld [vmem:[%s2 + $0x30] sm:$0xff]
        %v202 = vld [vmem:[%s2 + $0x38] sm:$0xff]
        %v203 = vld [vmem:[%s2 + $0x40] sm:$0xff]
        %v204 = vld [vmem:[%s2 + $0x48] sm:$0xff]
        %v205 = vld [vmem:[%s2 + $0x50] sm:$0xff]
        %v206 = vld [vmem:[%s2 + $0x58] sm:$0xff]
        %v207 = vld [vmem:[%s2 + $0x60] sm:$0xff]
        %v208 = vld [vmem:[%s2 + $0x68] sm:$0xff]
        %v209 = vld [vmem:[%s2 + $0x70] sm:$0xff]
        %v210 = vld [vmem:[%s2 + $0x78] sm:$0xff]
        %211 = vmatpush.msra.mxu0 %v210
        %212 = vmatpush.msra.mxu0 %v209
        %213 = vmatpush.msra.mxu0 %v208
        %214 = vmatpush.msra.mxu0 %v207
        %215 = vmatpush.msra.mxu0 %v206
        %216 = vmatpush.msra.mxu0 %v205
        %217 = vmatpush.msra.mxu0 %v204
        %218 = vmatpush.msra.mxu0 %v203
        %219 = vmatpush.msra.mxu0 %v202
        %220 = vmatpush.msra.mxu0 %v201
        %221 = vmatpush.msra.mxu0 %v200
        %222 = vmatpush.msra.mxu0 %v199
        %223 = vmatpush.msra.mxu0 %v198
        %224 = vmatpush.msra.mxu0 %v197
        %225 = vmatpush.msra.mxu0 %v196
        %226 = vmatpush.msra.mxu0 %v195
        %227 = vmatmul.f32.gmra.mxu0 %v194
        %v228 = vpop.f32.mrf.mxu0
        %v229 = vadd.f32 0.0, %v228
        %230 = vdwg.mxu0
        %v231 = vmul.f32 %v194, %v229
        %v232 = vld [vmem:[%s3] sm:$0xff]
        %v233 = vld [vmem:[%s3 + $0x8] sm:$0xff]
        %v234 = vld [vmem:[%s3 + $0x10] sm:$0xff]
        %v235 = vld [vmem:[%s3 + $0x18] sm:$0xff]
        %v236 = vld [vmem:[%s3 + $0x20] sm:$0xff]
        %v237 = vld [vmem:[%s3 + $0x28] sm:$0xff]
        %v238 = vld [vmem:[%s3 + $0x30] sm:$0xff]
        %v239 = vld [vmem:[%s3 + $0x38] sm:$0xff]
        %v240 = vld [vmem:[%s3 + $0x40] sm:$0xff]
        %v241 = vld [vmem:[%s3 + $0x48] sm:$0xff]
        %v242 = vld [vmem:[%s3 + $0x50] sm:$0xff]
        %v243 = vld [vmem:[%s3 + $0x58] sm:$0xff]
        %v244 = vld [vmem:[%s3 + $0x60] sm:$0xff]
        %v245 = vld [vmem:[%s3 + $0x68] sm:$0xff]
        %v246 = vld [vmem:[%s3 + $0x70] sm:$0xff]
        %v247 = vld [vmem:[%s3 + $0x78] sm:$0xff]
        %s248 = sld [smem:[#allocation2]]
        %v249 = vstv %s248
        %250 = vmatpush.msra.mxu0 %v247
        %251 = vmatpush.msra.mxu0 %v246
        %252 = vmatpush.msra.mxu0 %v245
        %253 = vmatpush.msra.mxu0 %v244
        %254 = vmatpush.msra.mxu0 %v243
        %255 = vmatpush.msra.mxu0 %v242
        %256 = vmatpush.msra.mxu0 %v241
        %257 = vmatpush.msra.mxu0 %v240
        %258 = vmatpush.msra.mxu0 %v239
        %259 = vmatpush.msra.mxu0 %v238
        %260 = vmatpush.msra.mxu0 %v237
        %261 = vmatpush.msra.mxu0 %v236
        %262 = vmatpush.msra.mxu0 %v235
        %263 = vmatpush.msra.mxu0 %v234
        %264 = vmatpush.msra.mxu0 %v233
        %265 = vmatpush.msra.mxu0 %v232
        %266 = vmatmul.f32.gmra.mxu0 %v231
        %v267 = vpop.f32.mrf.mxu0
        %v268 = vadd.f32 %v249, %v267
        %269 = vdwg.mxu0
        %vm270 = vcmask 130048
        %271 = vst.msk [vmem:[%s189] sm:$0xff] %vm270, %v268
        %s272 = sand.u32 %s116, 1
        %s273 = scalar_lea.sflag [#allocation4], %s272
        %s274 = sand.u32 %s116, 1
        %s275 = smul.addr %s274, 8
        %s276 = scalar_lea.vmem [#allocation3], %s275
        // Predicated region
        $region37: #{tpu_custom_call.1} parent=35 // pred_check
          %p277 = pneg %p126
        $region38: #{tpu_custom_call.1} parent=35 // pred_check_branch
          %279 = sbr.rel (%p277) target = $region40
        $region39: #{tpu_custom_call.1} parent=35 // pred_region
          %281 = vsyncadd %s273, 0
          %s282 = smul.addr %s19, 8
          %s283 = scalar_lea.hbm %s4, %s282
          %s285 = sshll.u32 %s276, 4
          %s286 = int_to_ptr.vmem [resolvable:$true] %s285
          %s287 = sshll.u32 %s283, 4
          %s288 = int_to_ptr.hbm [resolvable:$true] %s287
          %290 = dma.vmem_to_hbm [thread:$0]  %s286, 128, %s288, %s273
        $region40: #{tpu_custom_call.1} parent=35 // pred_fallthru
          _
      $region36: #{tpu_custom_call.1} parent=5 // pred_fallthru
        _
      %p291 = scmp.le.s32.totalorder 2, %s14
      // Predicated region
      $region41: #{tpu_custom_call.1} parent=5 // pred_check
        %p292 = pneg %p291
      $region42: #{tpu_custom_call.1} parent=5 // pred_check_branch
        %294 = sbr.rel (%p292) target = $region44
      $region43: #{tpu_custom_call.1} parent=5 // pred_region
        %s295 = ssub.s32 %s14, 2
        // Predicated region
        $region45: #{tpu_custom_call.1} parent=43 // pred_check
          %p296 = pneg %p132
        $region46: #{tpu_custom_call.1} parent=43 // pred_check_branch
          %298 = sbr.rel (%p296) target = $region48
        $region47: #{tpu_custom_call.1} parent=43 // pred_region
          %s299 = sand.u32 %s117, 1
          %s300 = scalar_lea.sflag [#allocation4], %s299
          %s301 = sand.u32 %s117, 1
          %s302 = smul.addr %s301, 8
          %s303 = scalar_lea.vmem [#allocation3], %s302
          %305 = dma.done %s300, 128
        $region48: #{tpu_custom_call.1} parent=43 // pred_fallthru
          _
      $region44: #{tpu_custom_call.1} parent=5 // pred_fallthru
        _
    $region6: #{tpu_custom_call.1} parent=1 // loop_footer
      %s18 = sadd.s32 1, %s14
    $region7: #{tpu_custom_call.1} parent=1 // loop_footer_branch
      %13 = sbr.rel target = $region3
    $region8: #{tpu_custom_call.1} parent=1 // loop_exit
      _
    %306 = vsyncpa [#allocation4], 1
    %s307 = scalar_lea.sflag [#allocation4], 1
    %308 = vsyncpa %s307, 1

</llo_original>
